<compile_context>
chip_gen: v5e
topology: v5e:2x2
jax: 0.10.0
libtpu: 0.0.40
codegen_flags: <defaults>
</compile_context>

<pallas_src>
import jax
import jax.numpy as jnp
import numpy as np
from jax.experimental import pallas as pl
from jax.experimental.pallas import tpu as pltpu


def _round_up(x, m):
    return ((x + m - 1) // m) * m


# ---------------------------------------------------------------------------
# Kernel 1: feature transform H = x @ W, tiled over node-row blocks.
# ---------------------------------------------------------------------------
def _xw_kernel(x_ref, w_ref, h_ref):
    h_ref[...] = jnp.dot(
        x_ref[...], w_ref[...], preferred_element_type=jnp.float32
    ).astype(h_ref.dtype)


# ---------------------------------------------------------------------------
# Kernel 2: aggregation out = A @ H, standard tiled accumulator matmul.
# ---------------------------------------------------------------------------
def _aggr_kernel(a_ref, h_ref, o_ref, acc_ref):
    @pl.when(pl.program_id(2) == 0)
    def _():
        acc_ref[...] = jnp.zeros_like(acc_ref)

    acc_ref[...] += jnp.dot(
        a_ref[...], h_ref[...], preferred_element_type=jnp.float32
    )

    @pl.when(pl.program_id(2) == pl.num_programs(2) - 1)
    def _():
        o_ref[...] = acc_ref[...].astype(o_ref.dtype)


def example_conv2_forward(x, edge_index, weight):
    """x: [N, dim_in] f32, edge_index: [2, E] i32 (row0=src j, row1=dst i),
    weight: [dim_in, dim_out] f32.  Returns [N, dim_out] f32."""
    n, dim_in = x.shape
    dim_out = weight.shape[1]

    # --- tile selection (MXU-friendly; biggest tiles that comfortably fit
    # VMEM with double-buffering) ---------------------------------------------
    if n >= 512:
        tm, tk = 256, 512
    elif n > 128:
        tm = tk = 256
    else:
        tm = tk = 128
    n_pad = _round_up(n, max(tm, tk))
    dout_p = _round_up(dim_out, 128)                       # lane-dense output
    tn = 256 if (dout_p % 256 == 0) else 128

    # --- plain-JAX glue: pad operands (bf16 feeds), build dense adjacency ---
    x_p = jnp.zeros((n_pad, dim_in), jnp.bfloat16).at[:n, :].set(
        x.astype(jnp.bfloat16))
    w_p = jnp.zeros((dim_in, dout_p), jnp.bfloat16).at[:, :dim_out].set(
        weight.astype(jnp.bfloat16))

    src, dst = edge_index[0], edge_index[1]
    # A[dst, src] += 1 (handles multi-edges like scatter_add).  Built in f32
    # for exact counting, cast to bf16 (exact for multiplicities <= 256).
    adj = jnp.zeros((n_pad, n_pad), jnp.float32).at[dst, src].add(1.0)
    adj = adj.astype(jnp.bfloat16)

    # --- Kernel 1: H = x @ W  (bf16 MXU feed, f32 accumulation) -------------
    h = pl.pallas_call(
        _xw_kernel,
        out_shape=jax.ShapeDtypeStruct((n_pad, dout_p), jnp.bfloat16),
        grid_spec=pltpu.PrefetchScalarGridSpec(
            num_scalar_prefetch=0,
            grid=(n_pad // tm,),
            in_specs=[
                pl.BlockSpec((tm, dim_in), lambda i: (i, 0)),
                pl.BlockSpec((dim_in, dout_p), lambda i: (0, 0)),
            ],
            out_specs=pl.BlockSpec((tm, dout_p), lambda i: (i, 0)),
        ),
        compiler_params=pltpu.CompilerParams(
            dimension_semantics=("parallel",)),
    )(x_p, w_p)

    # --- Kernel 2: out = A @ H  (bf16 MXU, f32 accumulation) ----------------
    out_p = pl.pallas_call(
        _aggr_kernel,
        out_shape=jax.ShapeDtypeStruct((n_pad, dout_p), jnp.float32),
        grid_spec=pltpu.PrefetchScalarGridSpec(
            num_scalar_prefetch=0,
            grid=(n_pad // tm, dout_p // tn, n_pad // tk),
            in_specs=[
                pl.BlockSpec((tm, tk), lambda i, j, k: (i, k)),
                pl.BlockSpec((tk, tn), lambda i, j, k: (k, j)),
            ],
            out_specs=pl.BlockSpec((tm, tn), lambda i, j, k: (i, j)),
            scratch_shapes=[pltpu.VMEM((tm, tn), jnp.float32)],
        ),
        compiler_params=pltpu.CompilerParams(
            dimension_semantics=("parallel", "parallel", "arbitrary")),
    )(adj, h)

    # Slice away node-row and lane padding.
    return out_p[:n, :dim_out]


def glorot_uniform(key, shape):
    fan_in, fan_out = shape
    limit = np.sqrt(6.0 / (fan_in + fan_out))
    return jax.random.uniform(key, shape, jnp.float32, -limit, limit)


if __name__ == "__main__":
    key = jax.random.PRNGKey(0)
    k_x, k_w, k_e = jax.random.split(key, 3)

    num_nodes = 8
    dim_in = 32
    dim_out = 16
    num_edges = 24

    x = jax.random.normal(k_x, (num_nodes, dim_in), jnp.float32)
    weight = glorot_uniform(k_w, (dim_in, dim_out))
    edge_index = jax.random.randint(k_e, (2, num_edges), 0, num_nodes,
                                    dtype=jnp.int32)

    fwd = jax.jit(example_conv2_forward)
    out = fwd(x, edge_index, weight)
    out = jax.block_until_ready(out)

    # Pure-JAX f32 reference: h = xW, then scatter-add messages h[src] -> dst.
    h_ref = x @ weight
    ref = jax.ops.segment_sum(h_ref[edge_index[0]], edge_index[1],
                              num_segments=num_nodes)
    # Tolerance loosened for the bf16 MXU path (f32 accumulation retained).
    np.testing.assert_allclose(np.asarray(out), np.asarray(ref),
                               rtol=2e-2, atol=1e-1)

    print("KERNEL_OK")
</pallas_src>

<mosaic_0001>
module attributes {stable_mosaic.version = 11 : i64} {
  func.func @_xw_kernel(%arg0: i32, %arg1: memref<128x32xbf16, #tpu.memory_space<vmem>>, %arg2: memref<32x128xbf16, #tpu.memory_space<vmem>>, %arg3: memref<128x128xbf16, #tpu.memory_space<vmem>>) attributes {dimension_semantics = [#tpu.dimension_semantics<parallel>], iteration_bounds = array<i64: 1>, scalar_prefetch = 0 : i64, scratch_operands = 0 : i64, tpu.core_type = #tpu.core_type<tc>, window_params = [{transform_indices = @transform_0, window_bounds = array<i64: 128, 32>}, {pipeline_mode = #tpu.pipeline_mode<synchronous>, transform_indices = @transform_1, window_bounds = array<i64: 32, 128>}, {transform_indices = @transform_2, window_bounds = array<i64: 128, 128>}]} {
    %c0 = arith.constant 0 : index
    %c0_0 = arith.constant 0 : index
    %0 = vector.load %arg1[%c0, %c0_0] : memref<128x32xbf16, #tpu.memory_space<vmem>>, vector<128x32xbf16>
    %c0_1 = arith.constant 0 : index
    %c0_2 = arith.constant 0 : index
    %1 = vector.load %arg2[%c0_1, %c0_2] : memref<32x128xbf16, #tpu.memory_space<vmem>>, vector<32x128xbf16>
    %cst = arith.constant dense<0.000000e+00> : vector<128x128xf32>
    %2 = tpu.matmul %0, %1, %cst {dimension_numbers = #tpu.dot_dimension_numbers<[1], [0], [0], [1], [0, 0, 1, 1], [], []>} : vector<128x32xbf16>, vector<32x128xbf16>, vector<128x128xf32> -> vector<128x128xf32>
    %3 = arith.truncf %2 : vector<128x128xf32> to vector<128x128xbf16>
    %c0_3 = arith.constant 0 : index
    %c0_4 = arith.constant 0 : index
    %4 = vector.load %arg3[%c0_3, %c0_4] : memref<128x128xbf16, #tpu.memory_space<vmem>>, vector<128x128xbf16>
    tpu.vector_store %arg3[%c0_3, %c0_4], %3 {strides = array<i32>} : memref<128x128xbf16, #tpu.memory_space<vmem>>, vector<128x128xbf16>,
    return
  }
  func.func @transform_0(%arg0: i32) -> (i32, i32) {
    %c0_i32 = arith.constant 0 : i32
    %c0_i32_0 = arith.constant 0 : i32
    return %arg0, %c0_i32 : i32, i32
  }
  func.func @transform_1(%arg0: i32) -> (i32, i32) {
    %c0_i32 = arith.constant 0 : i32
    %c0_i32_0 = arith.constant 0 : i32
    %c0_i32_1 = arith.constant 0 : i32
    return %c0_i32, %c0_i32_0 : i32, i32
  }
  func.func @transform_2(%arg0: i32) -> (i32, i32) {
    %c0_i32 = arith.constant 0 : i32
    %c0_i32_0 = arith.constant 0 : i32
    return %arg0, %c0_i32 : i32, i32
  }
}

module attributes {stable_mosaic.version = 11 : i64} {
  func.func @_aggr_kernel(%arg0: i32, %arg1: i32, %arg2: i32, %arg3: memref<128x128xbf16, #tpu.memory_space<vmem>>, %arg4: memref<128x128xbf16, #tpu.memory_space<vmem>>, %arg5: memref<128x128xf32, #tpu.memory_space<vmem>>, %arg6: memref<128x128xf32, #tpu.memory_space<vmem>>) attributes {dimension_semantics = [#tpu.dimension_semantics<parallel>, #tpu.dimension_semantics<parallel>, #tpu.dimension_semantics<arbitrary>], iteration_bounds = array<i64: 1, 1, 1>, scalar_prefetch = 0 : i64, scratch_operands = 1 : i64, tpu.core_type = #tpu.core_type<tc>, window_params = [{transform_indices = @transform_0, window_bounds = array<i64: 128, 128>}, {transform_indices = @transform_1, window_bounds = array<i64: 128, 128>}, {transform_indices = @transform_2, window_bounds = array<i64: 128, 128>}]} {
    %c0_i32 = arith.constant 0 : i32
    %0 = arith.cmpi eq, %arg2, %c0_i32 : i32
    %1 = arith.extui %0 : i1 to i32
    %c0_i32_0 = arith.constant 0 : i32
    %2 = arith.cmpi ne, %1, %c0_i32_0 : i32
    scf.if %2 {
      %cst_10 = arith.constant 0.000000e+00 : f32
      %12 = vector.broadcast %cst_10 : f32 to vector<128x128xf32>
      %c0_11 = arith.constant 0 : index
      %c0_12 = arith.constant 0 : index
      %13 = vector.load %arg6[%c0_11, %c0_12] : memref<128x128xf32, #tpu.memory_space<vmem>>, vector<128x128xf32>
      tpu.vector_store %arg6[%c0_11, %c0_12], %12 {strides = array<i32>} : memref<128x128xf32, #tpu.memory_space<vmem>>, vector<128x128xf32>,
    } else {
    }
    %c0 = arith.constant 0 : index
    %c0_1 = arith.constant 0 : index
    %3 = vector.load %arg6[%c0, %c0_1] : memref<128x128xf32, #tpu.memory_space<vmem>>, vector<128x128xf32>
    %c0_2 = arith.constant 0 : index
    %c0_3 = arith.constant 0 : index
    %4 = vector.load %arg3[%c0_2, %c0_3] : memref<128x128xbf16, #tpu.memory_space<vmem>>, vector<128x128xbf16>
    %c0_4 = arith.constant 0 : index
    %c0_5 = arith.constant 0 : index
    %5 = vector.load %arg4[%c0_4, %c0_5] : memref<128x128xbf16, #tpu.memory_space<vmem>>, vector<128x128xbf16>
    %cst = arith.constant dense<0.000000e+00> : vector<128x128xf32>
    %6 = tpu.matmul %4, %5, %cst {dimension_numbers = #tpu.dot_dimension_numbers<[1], [0], [0], [1], [0, 0, 1, 1], [], []>} : vector<128x128xbf16>, vector<128x128xbf16>, vector<128x128xf32> -> vector<128x128xf32>
    %7 = arith.addf %3, %6 : vector<128x128xf32>
    %c0_6 = arith.constant 0 : index
    %c0_7 = arith.constant 0 : index
    %8 = vector.load %arg6[%c0_6, %c0_7] : memref<128x128xf32, #tpu.memory_space<vmem>>, vector<128x128xf32>
    tpu.vector_store %arg6[%c0_6, %c0_7], %7 {strides = array<i32>} : memref<128x128xf32, #tpu.memory_space<vmem>>, vector<128x128xf32>,
    %c0_i32_8 = arith.constant 0 : i32
    %9 = arith.cmpi eq, %arg2, %c0_i32_8 : i32
    %10 = arith.extui %9 : i1 to i32
    %c0_i32_9 = arith.constant 0 : i32
    %11 = arith.cmpi ne, %10, %c0_i32_9 : i32
    scf.if %11 {
      %c0_10 = arith.constant 0 : index
      %c0_11 = arith.constant 0 : index
      %12 = vector.load %arg6[%c0_10, %c0_11] : memref<128x128xf32, #tpu.memory_space<vmem>>, vector<128x128xf32>
      %c0_12 = arith.constant 0 : index
      %c0_13 = arith.constant 0 : index
      %13 = vector.load %arg5[%c0_12, %c0_13] : memref<128x128xf32, #tpu.memory_space<vmem>>, vector<128x128xf32>
      tpu.vector_store %arg5[%c0_12, %c0_13], %12 {strides = array<i32>} : memref<128x128xf32, #tpu.memory_space<vmem>>, vector<128x128xf32>,
    } else {
    }
    return
  }
  func.func @transform_0(%arg0: i32, %arg1: i32, %arg2: i32) -> (i32, i32) {
    %c0_i32 = arith.constant 0 : i32
    return %arg0, %arg2 : i32, i32
  }
  func.func @transform_1(%arg0: i32, %arg1: i32, %arg2: i32) -> (i32, i32) {
    %c0_i32 = arith.constant 0 : i32
    return %arg2, %arg1 : i32, i32
  }
  func.func @transform_2(%arg0: i32, %arg1: i32, %arg2: i32) -> (i32, i32) {
    %c0_i32 = arith.constant 0 : i32
    return %arg0, %arg1 : i32, i32
  }
}

</mosaic_0001>

<llo_original>
// kernel: example_conv2_forward.2
$region0: #{example_conv2_forward.2}
  #allocation0 [shape = 'u32[]', space=smem, size = 0x4, offset = 0x4, fixed_abs, tag = 'smem constant byte address 0x4 - core index']
  #allocation1 [shape = 'u32[72,128]{1,0:T(1,128)}', space=vmem, size = 0x9000, scoped, tag = 'internal scratch']
  %s0 = inlined_call_operand.vmem [shape: bf16[128,32], index: 0, kind: input, shape index: {}]
  %s1 = inlined_call_operand.vmem [shape: bf16[32,128], index: 1, kind: input, shape index: {}]
  %s2 = inlined_call_operand.vmem [shape: bf16[128,128], index: 2, kind: output, shape index: {}]
  %s3 = sld [smem:[#allocation0]]
  $region18: #{example_conv2_forward.2} parent=0
    _
  %s5 = ssub.s32 1, %s3
  %s6 = scalar_select 0, %s5, %s3
  // Predicated region
  $region2: #{example_conv2_forward.2} parent=0 // pred_check
    _
  $region3: #{example_conv2_forward.2} parent=0 // pred_check_branch
    %8 = sbr.rel (0) target = $region5
  $region4: #{example_conv2_forward.2} parent=0 // pred_region
    _
  $region5: #{example_conv2_forward.2} parent=0 // pred_fallthru
    _
  // Predicated region
  $region6: #{example_conv2_forward.2} parent=0 // pred_check
    _
  $region7: #{example_conv2_forward.2} parent=0 // pred_check_branch
    %10 = sbr.rel (0) target = $region9
  $region8: #{example_conv2_forward.2} parent=0 // pred_region
    _
  $region9: #{example_conv2_forward.2} parent=0 // pred_fallthru
    _
  %v12 = vld [vmem:[%s0] sm:$0xf]
  %v13 = vld [vmem:[%s0 + $0x4] sm:$0xf]
  %v14 = vld [vmem:[%s0 + $0x8] sm:$0xf]
  %v15 = vld [vmem:[%s0 + $0xc] sm:$0xf]
  %v16 = vld [vmem:[%s0 + $0x10] sm:$0xf]
  %v17 = vld [vmem:[%s0 + $0x14] sm:$0xf]
  %v18 = vld [vmem:[%s0 + $0x18] sm:$0xf]
  %v19 = vld [vmem:[%s0 + $0x1c] sm:$0xf]
  %v20 = vld [vmem:[%s0 + $0x20] sm:$0xf]
  %v21 = vld [vmem:[%s0 + $0x24] sm:$0xf]
  %v22 = vld [vmem:[%s0 + $0x28] sm:$0xf]
  %v23 = vld [vmem:[%s0 + $0x2c] sm:$0xf]
  %v24 = vld [vmem:[%s0 + $0x30] sm:$0xf]
  %v25 = vld [vmem:[%s0 + $0x34] sm:$0xf]
  %v26 = vld [vmem:[%s0 + $0x38] sm:$0xf]
  %v27 = vld [vmem:[%s0 + $0x3c] sm:$0xf]
  %v28 = vld [vmem:[%s1] sm:$0xf]
  %v29 = vld [vmem:[%s1 + $0x4] sm:$0xf]
  %v30 = vld [vmem:[%s1 + $0x8] sm:$0xf]
  %v31 = vld [vmem:[%s1 + $0xc] sm:$0xf]
  %v48 = vunpack.c.l.b16 %v12
  %v49 = vunpack.c.l.b16 %v13
  %v50 = vunpack.c.l.b16 %v14
  %v51 = vunpack.c.l.b16 %v15
  %v52 = vunpack.c.l.b16 %v16
  %v53 = vunpack.c.l.b16 %v17
  %v54 = vunpack.c.l.b16 %v18
  %v55 = vunpack.c.l.b16 %v19
  %v56 = vunpack.c.l.b16 %v20
  %v57 = vunpack.c.l.b16 %v21
  %v58 = vunpack.c.l.b16 %v22
  %v59 = vunpack.c.l.b16 %v23
  %v60 = vunpack.c.l.b16 %v24
  %v61 = vunpack.c.l.b16 %v25
  %v62 = vunpack.c.l.b16 %v26
  %v63 = vunpack.c.l.b16 %v27
  %v64 = vpack.c.b16 %v49, %v48
  %v65 = vpack.c.b16 %v51, %v50
  %v66 = vpack.c.b16 %v53, %v52
  %v67 = vpack.c.b16 %v55, %v54
  %v68 = vpack.c.b16 %v57, %v56
  %v69 = vpack.c.b16 %v59, %v58
  %v70 = vpack.c.b16 %v61, %v60
  %v71 = vpack.c.b16 %v63, %v62
  %v76 = vunpack.c.l.b16 %v28
  %v77 = vunpack.c.l.b16 %v29
  %v78 = vunpack.c.l.b16 %v30
  %v79 = vunpack.c.l.b16 %v31
  %v80 = vpack.c.b16 %v77, %v76
  %v81 = vpack.c.b16 %v79, %v78
  %vm84 = vcmask 261120
  %v86 = vsel %vm84, %v64, 0
  %v89 = vsel %vm84, %v65, 0
  %v92 = vsel %vm84, %v66, 0
  %v95 = vsel %vm84, %v67, 0
  %v98 = vsel %vm84, %v68, 0
  %v101 = vsel %vm84, %v69, 0
  %v104 = vsel %vm84, %v70, 0
  %v107 = vsel %vm84, %v71, 0
  %109 = vmatpush.bf16.msra.mxu0 0
  %110 = vmatpush.bf16.msra.mxu0 0
  %111 = vmatpush.bf16.msra.mxu0 0
  %112 = vmatpush.bf16.msra.mxu0 0
  %113 = vmatpush.bf16.msra.mxu0 0
  %114 = vmatpush.bf16.msra.mxu0 0
  %115 = vmatpush.bf16.msra.mxu0 %v81
  %116 = vmatpush.bf16.msra.mxu0 %v80
  %117 = vmatmul.bf16.gmra.mxu0 %v86
  %v118 = vpop.f32.mrf.mxu0
  %v119 = vadd.f32 0.0, %v118
  %v120 = vpop.f32.mrf.mxu0
  %v121 = vadd.f32 0.0, %v120
  %122 = vmatmul.bf16.gmra.mxu0 %v89
  %v123 = vpop.f32.mrf.mxu0
  %v124 = vadd.f32 0.0, %v123
  %v125 = vpop.f32.mrf.mxu0
  %v126 = vadd.f32 0.0, %v125
  %127 = vmatmul.bf16.gmra.mxu0 %v92
  %v128 = vpop.f32.mrf.mxu0
  %v129 = vadd.f32 0.0, %v128
  %v130 = vpop.f32.mrf.mxu0
  %v131 = vadd.f32 0.0, %v130
  %132 = vmatmul.bf16.gmra.mxu0 %v95
  %v133 = vpop.f32.mrf.mxu0
  %v134 = vadd.f32 0.0, %v133
  %v135 = vpop.f32.mrf.mxu0
  %v136 = vadd.f32 0.0, %v135
  %137 = vmatmul.bf16.gmra.mxu0 %v98
  %v138 = vpop.f32.mrf.mxu0
  %v139 = vadd.f32 0.0, %v138
  %v140 = vpop.f32.mrf.mxu0
  %v141 = vadd.f32 0.0, %v140
  %142 = vmatmul.bf16.gmra.mxu0 %v101
  %v143 = vpop.f32.mrf.mxu0
  %v144 = vadd.f32 0.0, %v143
  %v145 = vpop.f32.mrf.mxu0
  %v146 = vadd.f32 0.0, %v145
  %147 = vmatmul.bf16.gmra.mxu0 %v104
  %v148 = vpop.f32.mrf.mxu0
  %v149 = vadd.f32 0.0, %v148
  %v150 = vpop.f32.mrf.mxu0
  %v151 = vadd.f32 0.0, %v150
  %152 = vmatmul.bf16.gmra.mxu0 %v107
  %v153 = vpop.f32.mrf.mxu0
  %v154 = vadd.f32 0.0, %v153
  %v155 = vpop.f32.mrf.mxu0
  %v156 = vadd.f32 0.0, %v155
  %157 = vdwg.mxu0
  %v158 = vpack.c.bf16 %v119, %v119
  %v159 = vpack.c.bf16 %v121, %v121
  %v160 = vpack.c.bf16 %v124, %v124
  %v161 = vpack.c.bf16 %v126, %v126
  %v162 = vpack.c.bf16 %v129, %v129
  %v163 = vpack.c.bf16 %v131, %v131
  %v164 = vpack.c.bf16 %v134, %v134
  %v165 = vpack.c.bf16 %v136, %v136
  %v166 = vpack.c.bf16 %v139, %v139
  %v167 = vpack.c.bf16 %v141, %v141
  %v168 = vpack.c.bf16 %v144, %v144
  %v169 = vpack.c.bf16 %v146, %v146
  %v170 = vpack.c.bf16 %v149, %v149
  %v171 = vpack.c.bf16 %v151, %v151
  %v172 = vpack.c.bf16 %v154, %v154
  %v173 = vpack.c.bf16 %v156, %v156
  %174 = vst [vmem:[%s2] sm:$0xf] %v158
  %175 = vst [vmem:[%s2 + $0x4] sm:$0xf] %v159
  %176 = vst [vmem:[%s2 + $0x8] sm:$0xf] %v160
  %177 = vst [vmem:[%s2 + $0xc] sm:$0xf] %v161
  %178 = vst [vmem:[%s2 + $0x10] sm:$0xf] %v162
  %179 = vst [vmem:[%s2 + $0x14] sm:$0xf] %v163
  %180 = vst [vmem:[%s2 + $0x18] sm:$0xf] %v164
  %181 = vst [vmem:[%s2 + $0x1c] sm:$0xf] %v165
  %182 = vst [vmem:[%s2 + $0x20] sm:$0xf] %v166
  %183 = vst [vmem:[%s2 + $0x24] sm:$0xf] %v167
  %184 = vst [vmem:[%s2 + $0x28] sm:$0xf] %v168
  %185 = vst [vmem:[%s2 + $0x2c] sm:$0xf] %v169
  %186 = vst [vmem:[%s2 + $0x30] sm:$0xf] %v170
  %187 = vst [vmem:[%s2 + $0x34] sm:$0xf] %v171
  %188 = vst [vmem:[%s2 + $0x38] sm:$0xf] %v172
  %189 = vst [vmem:[%s2 + $0x3c] sm:$0xf] %v173
  // Predicated region
  $region10: #{example_conv2_forward.2} parent=0 // pred_check
    _
  $region11: #{example_conv2_forward.2} parent=0 // pred_check_branch
    %191 = sbr.rel (0) target = $region13
  $region12: #{example_conv2_forward.2} parent=0 // pred_region
    _
  $region13: #{example_conv2_forward.2} parent=0 // pred_fallthru
    _
  // Predicated region
  $region14: #{example_conv2_forward.2} parent=0 // pred_check
    _
  $region15: #{example_conv2_forward.2} parent=0 // pred_check_branch
    %193 = sbr.rel (0) target = $region17
  $region16: #{example_conv2_forward.2} parent=0 // pred_region
    _
  $region17: #{example_conv2_forward.2} parent=0 // pred_fallthru
    _

// kernel: example_conv2_forward.3
$region0: #{example_conv2_forward.3}
  #allocation0 [shape = 'u32[]', space=smem, size = 0x4, offset = 0x4, fixed_abs, tag = 'smem constant byte address 0x4 - core index']
  #allocation1 [shape = 'u32[72,128]{1,0:T(1,128)}', space=vmem, size = 0x9000, scoped, tag = 'internal scratch']
  #allocation2 [shape = 'f32[128,128]{1,0:T(8,128)}', space=vmem, size = 0x10000, scoped, tag = 'scratch operand']
  %s0 = inlined_call_operand.vmem [shape: bf16[128,128], index: 0, kind: input, shape index: {}]
  %s1 = inlined_call_operand.vmem [shape: bf16[128,128], index: 1, kind: input, shape index: {}]
  %s2 = inlined_call_operand.vmem [shape: f32[128,128], index: 2, kind: output, shape index: {}]
  %s3 = sld [smem:[#allocation0]]
  $region26: #{example_conv2_forward.3} parent=0
    _
  %s5 = ssub.s32 1, %s3
  %s6 = scalar_select 0, %s5, %s3
  // Predicated region
  $region2: #{example_conv2_forward.3} parent=0 // pred_check
    _
  $region3: #{example_conv2_forward.3} parent=0 // pred_check_branch
    %8 = sbr.rel (0) target = $region5
  $region4: #{example_conv2_forward.3} parent=0 // pred_region
    _
  $region5: #{example_conv2_forward.3} parent=0 // pred_fallthru
    _
  // Predicated region
  $region6: #{example_conv2_forward.3} parent=0 // pred_check
    _
  $region7: #{example_conv2_forward.3} parent=0 // pred_check_branch
    %10 = sbr.rel (0) target = $region9
  $region8: #{example_conv2_forward.3} parent=0 // pred_region
    _
  $region9: #{example_conv2_forward.3} parent=0 // pred_fallthru
    _
  %p11 = scmp.eq.s32.totalorder 0, 0
  // Predicated region
  $region10: #{example_conv2_forward.3} parent=0 // pred_check
    %p12 = pneg %p11
  $region11: #{example_conv2_forward.3} parent=0 // pred_check_branch
    %14 = sbr.rel (%p12) target = $region13
  $region12: #{example_conv2_forward.3} parent=0 // pred_region
    %15 = vst [vmem:[#allocation2] sm:$0xff] 0.0
    %16 = vst [vmem:[#allocation2 + $0x8] sm:$0xff] 0.0
    %17 = vst [vmem:[#allocation2 + $0x10] sm:$0xff] 0.0
    %18 = vst [vmem:[#allocation2 + $0x18] sm:$0xff] 0.0
    %19 = vst [vmem:[#allocation2 + $0x20] sm:$0xff] 0.0
    %20 = vst [vmem:[#allocation2 + $0x28] sm:$0xff] 0.0
    %21 = vst [vmem:[#allocation2 + $0x30] sm:$0xff] 0.0
    %22 = vst [vmem:[#allocation2 + $0x38] sm:$0xff] 0.0
    %23 = vst [vmem:[#allocation2 + $0x40] sm:$0xff] 0.0
    %24 = vst [vmem:[#allocation2 + $0x48] sm:$0xff] 0.0
    %25 = vst [vmem:[#allocation2 + $0x50] sm:$0xff] 0.0
    %26 = vst [vmem:[#allocation2 + $0x58] sm:$0xff] 0.0
    %27 = vst [vmem:[#allocation2 + $0x60] sm:$0xff] 0.0
    %28 = vst [vmem:[#allocation2 + $0x68] sm:$0xff] 0.0
    %29 = vst [vmem:[#allocation2 + $0x70] sm:$0xff] 0.0
    %30 = vst [vmem:[#allocation2 + $0x78] sm:$0xff] 0.0
  $region13: #{example_conv2_forward.3} parent=0 // pred_fallthru
    _
  %v31 = vld [vmem:[#allocation2] sm:$0xff]
  %v32 = vld [vmem:[#allocation2 + $0x8] sm:$0xff]
  %v33 = vld [vmem:[#allocation2 + $0x10] sm:$0xff]
  %v34 = vld [vmem:[#allocation2 + $0x18] sm:$0xff]
  %v35 = vld [vmem:[#allocation2 + $0x20] sm:$0xff]
  %v36 = vld [vmem:[#allocation2 + $0x28] sm:$0xff]
  %v37 = vld [vmem:[#allocation2 + $0x30] sm:$0xff]
  %v38 = vld [vmem:[#allocation2 + $0x38] sm:$0xff]
  %v39 = vld [vmem:[#allocation2 + $0x40] sm:$0xff]
  %v40 = vld [vmem:[#allocation2 + $0x48] sm:$0xff]
  %v41 = vld [vmem:[#allocation2 + $0x50] sm:$0xff]
  %v42 = vld [vmem:[#allocation2 + $0x58] sm:$0xff]
  %v43 = vld [vmem:[#allocation2 + $0x60] sm:$0xff]
  %v44 = vld [vmem:[#allocation2 + $0x68] sm:$0xff]
  %v45 = vld [vmem:[#allocation2 + $0x70] sm:$0xff]
  %v46 = vld [vmem:[#allocation2 + $0x78] sm:$0xff]
  %v47 = vld [vmem:[%s0] sm:$0xf]
  %v48 = vld [vmem:[%s0 + $0x4] sm:$0xf]
  %v49 = vld [vmem:[%s0 + $0x8] sm:$0xf]
  %v50 = vld [vmem:[%s0 + $0xc] sm:$0xf]
  %v51 = vld [vmem:[%s0 + $0x10] sm:$0xf]
  %v52 = vld [vmem:[%s0 + $0x14] sm:$0xf]
  %v53 = vld [vmem:[%s0 + $0x18] sm:$0xf]
  %v54 = vld [vmem:[%s0 + $0x1c] sm:$0xf]
  %v55 = vld [vmem:[%s0 + $0x20] sm:$0xf]
  %v56 = vld [vmem:[%s0 + $0x24] sm:$0xf]
  %v57 = vld [vmem:[%s0 + $0x28] sm:$0xf]
  %v58 = vld [vmem:[%s0 + $0x2c] sm:$0xf]
  %v59 = vld [vmem:[%s0 + $0x30] sm:$0xf]
  %v60 = vld [vmem:[%s0 + $0x34] sm:$0xf]
  %v61 = vld [vmem:[%s0 + $0x38] sm:$0xf]
  %v62 = vld [vmem:[%s0 + $0x3c] sm:$0xf]
  %v63 = vld [vmem:[%s1] sm:$0xf]
  %v64 = vld [vmem:[%s1 + $0x4] sm:$0xf]
  %v65 = vld [vmem:[%s1 + $0x8] sm:$0xf]
  %v66 = vld [vmem:[%s1 + $0xc] sm:$0xf]
  %v67 = vld [vmem:[%s1 + $0x10] sm:$0xf]
  %v68 = vld [vmem:[%s1 + $0x14] sm:$0xf]
  %v69 = vld [vmem:[%s1 + $0x18] sm:$0xf]
  %v70 = vld [vmem:[%s1 + $0x1c] sm:$0xf]
  %v71 = vld [vmem:[%s1 + $0x20] sm:$0xf]
  %v72 = vld [vmem:[%s1 + $0x24] sm:$0xf]
  %v73 = vld [vmem:[%s1 + $0x28] sm:$0xf]
  %v74 = vld [vmem:[%s1 + $0x2c] sm:$0xf]
  %v75 = vld [vmem:[%s1 + $0x30] sm:$0xf]
  %v76 = vld [vmem:[%s1 + $0x34] sm:$0xf]
  %v77 = vld [vmem:[%s1 + $0x38] sm:$0xf]
  %v78 = vld [vmem:[%s1 + $0x3c] sm:$0xf]
  %v95 = vunpack.c.l.b16 %v47
  %v96 = vunpack.c.l.b16 %v48
  %v97 = vunpack.c.l.b16 %v49
  %v98 = vunpack.c.l.b16 %v50
  %v99 = vunpack.c.l.b16 %v51
  %v100 = vunpack.c.l.b16 %v52
  %v101 = vunpack.c.l.b16 %v53
  %v102 = vunpack.c.l.b16 %v54
  %v103 = vunpack.c.l.b16 %v55
  %v104 = vunpack.c.l.b16 %v56
  %v105 = vunpack.c.l.b16 %v57
  %v106 = vunpack.c.l.b16 %v58
  %v107 = vunpack.c.l.b16 %v59
  %v108 = vunpack.c.l.b16 %v60
  %v109 = vunpack.c.l.b16 %v61
  %v110 = vunpack.c.l.b16 %v62
  %v111 = vpack.c.b16 %v96, %v95
  %v112 = vpack.c.b16 %v98, %v97
  %v113 = vpack.c.b16 %v100, %v99
  %v114 = vpack.c.b16 %v102, %v101
  %v115 = vpack.c.b16 %v104, %v103
  %v116 = vpack.c.b16 %v106, %v105
  %v117 = vpack.c.b16 %v108, %v107
  %v118 = vpack.c.b16 %v110, %v109
  %v143 = vunpack.c.l.b16 %v63
  %v144 = vunpack.c.l.b16 %v64
  %v145 = vunpack.c.l.b16 %v65
  %v146 = vunpack.c.l.b16 %v66
  %v147 = vunpack.c.l.b16 %v67
  %v148 = vunpack.c.l.b16 %v68
  %v149 = vunpack.c.l.b16 %v69
  %v150 = vunpack.c.l.b16 %v70
  %v151 = vunpack.c.l.b16 %v71
  %v152 = vunpack.c.l.b16 %v72
  %v153 = vunpack.c.l.b16 %v73
  %v154 = vunpack.c.l.b16 %v74
  %v155 = vunpack.c.l.b16 %v75
  %v156 = vunpack.c.l.b16 %v76
  %v157 = vunpack.c.l.b16 %v77
  %v158 = vunpack.c.l.b16 %v78
  %v159 = vpack.c.b16 %v144, %v143
  %v160 = vpack.c.b16 %v146, %v145
  %v161 = vpack.c.b16 %v148, %v147
  %v162 = vpack.c.b16 %v150, %v149
  %v163 = vpack.c.b16 %v152, %v151
  %v164 = vpack.c.b16 %v154, %v153
  %v165 = vpack.c.b16 %v156, %v155
  %v166 = vpack.c.b16 %v158, %v157
  %175 = vmatpush.bf16.msra.mxu0 %v166
  %176 = vmatpush.bf16.msra.mxu0 %v165
  %177 = vmatpush.bf16.msra.mxu0 %v164
  %178 = vmatpush.bf16.msra.mxu0 %v163
  %179 = vmatpush.bf16.msra.mxu0 %v162
  %180 = vmatpush.bf16.msra.mxu0 %v161
  %181 = vmatpush.bf16.msra.mxu0 %v160
  %182 = vmatpush.bf16.msra.mxu0 %v159
  %183 = vmatmul.bf16.gmra.mxu0 %v111
  %v184 = vpop.f32.mrf.mxu0
  %v185 = vadd.f32 0.0, %v184
  %v186 = vpop.f32.mrf.mxu0
  %v187 = vadd.f32 0.0, %v186
  %188 = vmatmul.bf16.gmra.mxu0 %v112
  %v189 = vpop.f32.mrf.mxu0
  %v190 = vadd.f32 0.0, %v189
  %v191 = vpop.f32.mrf.mxu0
  %v192 = vadd.f32 0.0, %v191
  %193 = vmatmul.bf16.gmra.mxu0 %v113
  %v194 = vpop.f32.mrf.mxu0
  %v195 = vadd.f32 0.0, %v194
  %v196 = vpop.f32.mrf.mxu0
  %v197 = vadd.f32 0.0, %v196
  %198 = vmatmul.bf16.gmra.mxu0 %v114
  %v199 = vpop.f32.mrf.mxu0
  %v200 = vadd.f32 0.0, %v199
  %v201 = vpop.f32.mrf.mxu0
  %v202 = vadd.f32 0.0, %v201
  %203 = vmatmul.bf16.gmra.mxu0 %v115
  %v204 = vpop.f32.mrf.mxu0
  %v205 = vadd.f32 0.0, %v204
  %v206 = vpop.f32.mrf.mxu0
  %v207 = vadd.f32 0.0, %v206
  %208 = vmatmul.bf16.gmra.mxu0 %v116
  %v209 = vpop.f32.mrf.mxu0
  %v210 = vadd.f32 0.0, %v209
  %v211 = vpop.f32.mrf.mxu0
  %v212 = vadd.f32 0.0, %v211
  %213 = vmatmul.bf16.gmra.mxu0 %v117
  %v214 = vpop.f32.mrf.mxu0
  %v215 = vadd.f32 0.0, %v214
  %v216 = vpop.f32.mrf.mxu0
  %v217 = vadd.f32 0.0, %v216
  %218 = vmatmul.bf16.gmra.mxu0 %v118
  %v219 = vpop.f32.mrf.mxu0
  %v220 = vadd.f32 0.0, %v219
  %v221 = vpop.f32.mrf.mxu0
  %v222 = vadd.f32 0.0, %v221
  %223 = vdwg.mxu0
  %v224 = vadd.f32 %v31, %v185
  %v225 = vadd.f32 %v32, %v187
  %v226 = vadd.f32 %v33, %v190
  %v227 = vadd.f32 %v34, %v192
  %v228 = vadd.f32 %v35, %v195
  %v229 = vadd.f32 %v36, %v197
  %v230 = vadd.f32 %v37, %v200
  %v231 = vadd.f32 %v38, %v202
  %v232 = vadd.f32 %v39, %v205
  %v233 = vadd.f32 %v40, %v207
  %v234 = vadd.f32 %v41, %v210
  %v235 = vadd.f32 %v42, %v212
  %v236 = vadd.f32 %v43, %v215
  %v237 = vadd.f32 %v44, %v217
  %v238 = vadd.f32 %v45, %v220
  %v239 = vadd.f32 %v46, %v222
  %240 = vst [vmem:[#allocation2] sm:$0xff] %v224
  %241 = vst [vmem:[#allocation2 + $0x8] sm:$0xff] %v225
  %242 = vst [vmem:[#allocation2 + $0x10] sm:$0xff] %v226
  %243 = vst [vmem:[#allocation2 + $0x18] sm:$0xff] %v227
  %244 = vst [vmem:[#allocation2 + $0x20] sm:$0xff] %v228
  %245 = vst [vmem:[#allocation2 + $0x28] sm:$0xff] %v229
  %246 = vst [vmem:[#allocation2 + $0x30] sm:$0xff] %v230
  %247 = vst [vmem:[#allocation2 + $0x38] sm:$0xff] %v231
  %248 = vst [vmem:[#allocation2 + $0x40] sm:$0xff] %v232
  %249 = vst [vmem:[#allocation2 + $0x48] sm:$0xff] %v233
  %250 = vst [vmem:[#allocation2 + $0x50] sm:$0xff] %v234
  %251 = vst [vmem:[#allocation2 + $0x58] sm:$0xff] %v235
  %252 = vst [vmem:[#allocation2 + $0x60] sm:$0xff] %v236
  %253 = vst [vmem:[#allocation2 + $0x68] sm:$0xff] %v237
  %254 = vst [vmem:[#allocation2 + $0x70] sm:$0xff] %v238
  %255 = vst [vmem:[#allocation2 + $0x78] sm:$0xff] %v239
  // Predicated region
  $region14: #{example_conv2_forward.3} parent=0 // pred_check
    %p256 = pneg %p11
  $region15: #{example_conv2_forward.3} parent=0 // pred_check_branch
    %258 = sbr.rel (%p256) target = $region17
  $region16: #{example_conv2_forward.3} parent=0 // pred_region
    %v259 = vld [vmem:[#allocation2] sm:$0xff]
    %v260 = vld [vmem:[#allocation2 + $0x8] sm:$0xff]
    %v261 = vld [vmem:[#allocation2 + $0x10] sm:$0xff]
    %v262 = vld [vmem:[#allocation2 + $0x18] sm:$0xff]
    %v263 = vld [vmem:[#allocation2 + $0x20] sm:$0xff]
    %v264 = vld [vmem:[#allocation2 + $0x28] sm:$0xff]
    %v265 = vld [vmem:[#allocation2 + $0x30] sm:$0xff]
    %v266 = vld [vmem:[#allocation2 + $0x38] sm:$0xff]
    %v267 = vld [vmem:[#allocation2 + $0x40] sm:$0xff]
    %v268 = vld [vmem:[#allocation2 + $0x48] sm:$0xff]
    %v269 = vld [vmem:[#allocation2 + $0x50] sm:$0xff]
    %v270 = vld [vmem:[#allocation2 + $0x58] sm:$0xff]
    %v271 = vld [vmem:[#allocation2 + $0x60] sm:$0xff]
    %v272 = vld [vmem:[#allocation2 + $0x68] sm:$0xff]
    %v273 = vld [vmem:[#allocation2 + $0x70] sm:$0xff]
    %v274 = vld [vmem:[#allocation2 + $0x78] sm:$0xff]
    %275 = vst [vmem:[%s2] sm:$0xff] %v259
    %276 = vst [vmem:[%s2 + $0x8] sm:$0xff] %v260
    %277 = vst [vmem:[%s2 + $0x10] sm:$0xff] %v261
    %278 = vst [vmem:[%s2 + $0x18] sm:$0xff] %v262
    %279 = vst [vmem:[%s2 + $0x20] sm:$0xff] %v263
    %280 = vst [vmem:[%s2 + $0x28] sm:$0xff] %v264
    %281 = vst [vmem:[%s2 + $0x30] sm:$0xff] %v265
    %282 = vst [vmem:[%s2 + $0x38] sm:$0xff] %v266
    %283 = vst [vmem:[%s2 + $0x40] sm:$0xff] %v267
    %284 = vst [vmem:[%s2 + $0x48] sm:$0xff] %v268
    %285 = vst [vmem:[%s2 + $0x50] sm:$0xff] %v269
    %286 = vst [vmem:[%s2 + $0x58] sm:$0xff] %v270
    %287 = vst [vmem:[%s2 + $0x60] sm:$0xff] %v271
    %288 = vst [vmem:[%s2 + $0x68] sm:$0xff] %v272
    %289 = vst [vmem:[%s2 + $0x70] sm:$0xff] %v273
    %290 = vst [vmem:[%s2 + $0x78] sm:$0xff] %v274
  $region17: #{example_conv2_forward.3} parent=0 // pred_fallthru
    _
  // Predicated region
  $region18: #{example_conv2_forward.3} parent=0 // pred_check
    _
  $region19: #{example_conv2_forward.3} parent=0 // pred_check_branch
    %292 = sbr.rel (0) target = $region21
  $region20: #{example_conv2_forward.3} parent=0 // pred_region
    _
  $region21: #{example_conv2_forward.3} parent=0 // pred_fallthru
    _
  // Predicated region
  $region22: #{example_conv2_forward.3} parent=0 // pred_check
    _
  $region23: #{example_conv2_forward.3} parent=0 // pred_check_branch
    %294 = sbr.rel (0) target = $region25
  $region24: #{example_conv2_forward.3} parent=0 // pred_region
    _
  $region25: #{example_conv2_forward.3} parent=0 // pred_fallthru
    _

</llo_original>
